<compile_context>
chip_gen: v6e
topology: v6e:2x2x1
jax: 0.10.0
libtpu: 0.0.40
codegen_flags: <defaults>
</compile_context>

<pallas_src>
import functools

import jax
import jax.numpy as jnp
from jax.experimental import pallas as pl
from jax.experimental.pallas import tpu as pltpu


# A (TB, 1) f32 VMEM accumulator pads its lane dim to 128 -> 512 bytes/row.
_ACC_BYTES_PER_ROW = 512


def _vmem_capacity_bytes():
    """Physical VMEM per TensorCore; conservative fallback if query fails."""
    try:
        return int(pltpu.get_tpu_info().vmem_capacity_bytes)
    except Exception:
        return 64 << 20  # v7x per-TC size; safe lower bound for v5e/v6e too.


def _choose_row_tile(B, D, itemsize):
    """Largest row tile whose double-buffered working set fits the budget.

    budget = min(48 MiB, physical VMEM - 20 MiB headroom):
      v5e/v6e (128 MiB physical) -> 48 MiB working set,
      v7x     ( 64 MiB physical) -> 44 MiB working set.
    Working set = 3 inputs x 2 pipeline buffers x TB x D x itemsize
                  + (TB, 1) f32 loss accumulator.
    """
    vmem_cap = _vmem_capacity_bytes()
    budget = min(48 << 20, max(16 << 20, vmem_cap - (20 << 20)))
    per_row = 3 * 2 * D * itemsize + _ACC_BYTES_PER_ROW
    tb = budget // max(per_row, 1)
    sub = max(8, 32 // max(itemsize, 1))   # sublane packing: f32=8, bf16=16, i8=32
    tb = max(sub, (tb // sub) * sub)
    if tb >= B:
        return B                           # single tile covers the whole batch
    return tb


def _triplet_loss_kernel(a_ref, p_ref, n_ref, out_ref, acc_ref, *,
                         margin, B, TB, num_tiles, needs_mask):
    i = pl.program_id(0)

    a = a_ref[...].astype(jnp.float32)
    p = p_ref[...].astype(jnp.float32)
    n = n_ref[...].astype(jnp.float32)

    # (a - p)^2 - (a - n)^2  ==  (n - p) * (2a - p - n)  -> one lane-reduce/row.
    d = jnp.sum((n - p) * (2.0 * a - p - n), axis=1, keepdims=True)   # (TB, 1)
    losses = jnp.maximum(d + margin, 0.0)                             # (TB, 1)

    @pl.when(i == 0)
    def _():
        acc_ref[...] = jnp.zeros_like(acc_ref)

    if needs_mask:
        last = num_tiles - 1

        # Steady state: no iota / compare / select.
        @pl.when(i != last)
        def _():
            acc_ref[...] += losses

        # Only the final tile can contain padded rows.
        @pl.when(i == last)
        def _():
            row = jax.lax.broadcasted_iota(jnp.int32, (TB, 1), 0)
            valid = (i * TB + row) < B
            acc_ref[...] += jnp.where(valid, losses, 0.0)
    else:
        acc_ref[...] += losses

    # Single cross-sublane reduce + SMEM write, once.
    @pl.when(i == num_tiles - 1)
    def _():
        out_ref[0, 0] = jnp.sum(acc_ref[...])


def triplet_loss(anchor, positive, negative, margin=1.0, size_average=True,
                 row_tile=None):
    """Pallas TripletLoss forward. anchor/positive/negative: (B, D).

    `row_tile` overrides the auto-chosen tile size (used to exercise the
    multi-tile / tail-mask path at small test shapes).
    """
    B, D = anchor.shape
    itemsize = jnp.dtype(anchor.dtype).itemsize

    if row_tile is None:
        TB = _choose_row_tile(B, D, itemsize)
    else:
        TB = min(int(row_tile), B)

    num_tiles = pl.cdiv(B, TB)
    needs_mask = (num_tiles * TB) != B

    kernel = functools.partial(
        _triplet_loss_kernel,
        margin=float(margin),
        B=B,
        TB=TB,
        num_tiles=num_tiles,
        needs_mask=needs_mask,
    )

    # Explicit VMEM limit so the scoped default never throttles the tile size;
    # capped at the chip's physical VMEM.
    vmem_cap = _vmem_capacity_bytes()
    working_set = 3 * 2 * TB * D * itemsize + TB * _ACC_BYTES_PER_ROW
    vmem_limit = int(min(vmem_cap, max(32 << 20, working_set + (8 << 20))))

    in_spec = pl.BlockSpec((TB, D), lambda i: (i, 0))

    out = pl.pallas_call(
        kernel,
        out_shape=jax.ShapeDtypeStruct((1, 1), jnp.float32),
        grid=(num_tiles,),
        in_specs=[in_spec, in_spec, in_spec],
        out_specs=pl.BlockSpec((1, 1), lambda i: (0, 0),
                               memory_space=pltpu.SMEM),
        scratch_shapes=[pltpu.VMEM((TB, 1), jnp.float32)],
        compiler_params=pltpu.CompilerParams(
            dimension_semantics=("arbitrary",),
            vmem_limit_bytes=vmem_limit),
        cost_estimate=pl.CostEstimate(
            flops=6 * B * D,
            transcendentals=0,
            bytes_accessed=3 * B * D * itemsize + 4),
    )(anchor, positive, negative)

    total = out[0, 0]
    return total / B if size_average else total


def _triplet_loss_ref(anchor, positive, negative, margin=1.0, size_average=True):
    a = anchor.astype(jnp.float32)
    p = positive.astype(jnp.float32)
    n = negative.astype(jnp.float32)
    dp = jnp.sum((a - p) ** 2, axis=1)
    dn = jnp.sum((a - n) ** 2, axis=1)
    losses = jnp.maximum(dp - dn + margin, 0.0)
    return jnp.mean(losses) if size_average else jnp.sum(losses)


if __name__ == "__main__":
    key = jax.random.PRNGKey(0)
    k_a, k_p, k_n = jax.random.split(key, 3)

    # Case 1: small batch, auto tile size (single tile).
    B, D = 8, 32
    anchor = jax.random.normal(k_a, (B, D), dtype=jnp.float32)
    positive = jax.random.normal(k_p, (B, D), dtype=jnp.float32)
    negative = jax.random.normal(k_n, (B, D), dtype=jnp.float32)

    out_mean = triplet_loss(anchor, positive, negative, 1.0, True)
    out_sum = triplet_loss(anchor, positive, negative, 1.0, False)
    jax.block_until_ready((out_mean, out_sum))
    assert jnp.allclose(out_mean, _triplet_loss_ref(anchor, positive, negative, 1.0, True),
                        rtol=1e-4, atol=1e-4)
    assert jnp.allclose(out_sum, _triplet_loss_ref(anchor, positive, negative, 1.0, False),
                        rtol=1e-4, atol=1e-4)

    # Case 2: auto tile size on a batch that is not a multiple of 8.
    B2, D2 = 100, 64
    k_a2, k_p2, k_n2 = jax.random.split(jax.random.PRNGKey(1), 3)
    anchor2 = jax.random.normal(k_a2, (B2, D2), dtype=jnp.float32)
    positive2 = jax.random.normal(k_p2, (B2, D2), dtype=jnp.float32)
    negative2 = jax.random.normal(k_n2, (B2, D2), dtype=jnp.float32)

    out2_mean = triplet_loss(anchor2, positive2, negative2, 1.0, True)
    out2_sum = triplet_loss(anchor2, positive2, negative2, 1.0, False)
    jax.block_until_ready((out2_mean, out2_sum))
    assert jnp.allclose(out2_mean, _triplet_loss_ref(anchor2, positive2, negative2, 1.0, True),
                        rtol=1e-4, atol=1e-4)
    assert jnp.allclose(out2_sum, _triplet_loss_ref(anchor2, positive2, negative2, 1.0, False),
                        rtol=1e-4, atol=1e-4)

    # Case 3: forced small row tile -> multi-tile streaming + tail masking
    # + VMEM accumulator finalize path.
    out3_mean = triplet_loss(anchor2, positive2, negative2, 1.0, True, row_tile=32)
    out3_sum = triplet_loss(anchor2, positive2, negative2, 1.0, False, row_tile=32)
    jax.block_until_ready((out3_mean, out3_sum))
    assert jnp.allclose(out3_mean, _triplet_loss_ref(anchor2, positive2, negative2, 1.0, True),
                        rtol=1e-4, atol=1e-4)
    assert jnp.allclose(out3_sum, _triplet_loss_ref(anchor2, positive2, negative2, 1.0, False),
                        rtol=1e-4, atol=1e-4)

    # Case 4: bf16 inputs (half HBM traffic), multi-tile with 16-row-aligned tile.
    anchor_bf = anchor2.astype(jnp.bfloat16)
    positive_bf = positive2.astype(jnp.bfloat16)
    negative_bf = negative2.astype(jnp.bfloat16)
    out_bf = triplet_loss(anchor_bf, positive_bf, negative_bf, 1.0, True, row_tile=48)
    jax.block_until_ready(out_bf)
    ref_bf = _triplet_loss_ref(anchor_bf, positive_bf, negative_bf, 1.0, True)
    assert jnp.allclose(out_bf, ref_bf, rtol=1e-2, atol=1e-2)

    print("KERNEL_OK")
</pallas_src>

<mosaic_0001>
module attributes {stable_mosaic.version = 11 : i64} {
  func.func @_triplet_loss_kernel(%arg0: i32, %arg1: memref<8x32xf32, #tpu.memory_space<vmem>>, %arg2: memref<8x32xf32, #tpu.memory_space<vmem>>, %arg3: memref<8x32xf32, #tpu.memory_space<vmem>>, %arg4: memref<1x1xf32, #tpu.memory_space<smem>>, %arg5: memref<8x1xf32, #tpu.memory_space<vmem>>) attributes {dimension_semantics = [#tpu.dimension_semantics<arbitrary>], iteration_bounds = array<i64: 1>, scalar_prefetch = 0 : i64, scratch_operands = 1 : i64, tpu.core_type = #tpu.core_type<tc>, window_params = [{transform_indices = @transform_0, window_bounds = array<i64: 8, 32>}, {transform_indices = @transform_1, window_bounds = array<i64: 8, 32>}, {transform_indices = @transform_2, window_bounds = array<i64: 8, 32>}, {transform_indices = @transform_3, window_bounds = array<i64: 1, 1>}]} {
    %c0 = arith.constant 0 : index
    %c0_0 = arith.constant 0 : index
    %0 = vector.load %arg1[%c0, %c0_0] : memref<8x32xf32, #tpu.memory_space<vmem>>, vector<8x32xf32>
    %c0_1 = arith.constant 0 : index
    %c0_2 = arith.constant 0 : index
    %1 = vector.load %arg2[%c0_1, %c0_2] : memref<8x32xf32, #tpu.memory_space<vmem>>, vector<8x32xf32>
    %c0_3 = arith.constant 0 : index
    %c0_4 = arith.constant 0 : index
    %2 = vector.load %arg3[%c0_3, %c0_4] : memref<8x32xf32, #tpu.memory_space<vmem>>, vector<8x32xf32>
    %3 = arith.subf %2, %1 : vector<8x32xf32>
    %cst = arith.constant 2.000000e+00 : f32
    %4 = vector.broadcast %cst : f32 to vector<8x32xf32>
    %5 = arith.mulf %4, %0 : vector<8x32xf32>
    %6 = arith.subf %5, %1 : vector<8x32xf32>
    %7 = arith.subf %6, %2 : vector<8x32xf32>
    %8 = arith.mulf %3, %7 : vector<8x32xf32>
    %cst_5 = arith.constant dense<0.000000e+00> : vector<8xf32>
    %9 = vector.multi_reduction <add>, %8, %cst_5 [1] : vector<8x32xf32> to vector<8xf32>
    %10 = vector.shape_cast %9 : vector<8xf32> to vector<8x1xf32>
    %cst_6 = arith.constant 1.000000e+00 : f32
    %11 = vector.broadcast %cst_6 : f32 to vector<8x1xf32>
    %12 = arith.addf %10, %11 : vector<8x1xf32>
    %cst_7 = arith.constant 0.000000e+00 : f32
    %13 = vector.broadcast %cst_7 : f32 to vector<8x1xf32>
    %14 = arith.maximumf %12, %13 : vector<8x1xf32>
    %c0_i32 = arith.constant 0 : i32
    %15 = arith.cmpi eq, %arg0, %c0_i32 : i32
    %16 = arith.extui %15 : i1 to i32
    %c0_i32_8 = arith.constant 0 : i32
    %17 = arith.cmpi ne, %16, %c0_i32_8 : i32
    scf.if %17 {
      %cst_15 = arith.constant 0.000000e+00 : f32
      %24 = vector.broadcast %cst_15 : f32 to vector<8x1xf32>
      %c0_16 = arith.constant 0 : index
      %c0_17 = arith.constant 0 : index
      %25 = vector.load %arg5[%c0_16, %c0_17] : memref<8x1xf32, #tpu.memory_space<vmem>>, vector<8x1xf32>
      tpu.vector_store %arg5[%c0_16, %c0_17], %24 {strides = array<i32>} : memref<8x1xf32, #tpu.memory_space<vmem>>, vector<8x1xf32>,
    } else {
    }
    %c0_9 = arith.constant 0 : index
    %c0_10 = arith.constant 0 : index
    %18 = vector.load %arg5[%c0_9, %c0_10] : memref<8x1xf32, #tpu.memory_space<vmem>>, vector<8x1xf32>
    %19 = arith.addf %18, %14 : vector<8x1xf32>
    %c0_11 = arith.constant 0 : index
    %c0_12 = arith.constant 0 : index
    %20 = vector.load %arg5[%c0_11, %c0_12] : memref<8x1xf32, #tpu.memory_space<vmem>>, vector<8x1xf32>
    tpu.vector_store %arg5[%c0_11, %c0_12], %19 {strides = array<i32>} : memref<8x1xf32, #tpu.memory_space<vmem>>, vector<8x1xf32>,
    %c0_i32_13 = arith.constant 0 : i32
    %21 = arith.cmpi eq, %arg0, %c0_i32_13 : i32
    %22 = arith.extui %21 : i1 to i32
    %c0_i32_14 = arith.constant 0 : i32
    %23 = arith.cmpi ne, %22, %c0_i32_14 : i32
    scf.if %23 {
      %c0_15 = arith.constant 0 : index
      %c0_16 = arith.constant 0 : index
      %24 = vector.load %arg5[%c0_15, %c0_16] : memref<8x1xf32, #tpu.memory_space<vmem>>, vector<8x1xf32>
      %25 = vector.shape_cast %24 : vector<8x1xf32> to vector<1x8x1xf32>
      %cst_17 = arith.constant dense<0.000000e+00> : vector<1xf32>
      %26 = vector.multi_reduction <add>, %25, %cst_17 [1, 2] : vector<1x8x1xf32> to vector<1xf32>
      %27 = vector.shape_cast %26 : vector<1xf32> to vector<1x1x1xf32>
      %28 = vector.extract %27[0, 0, 0] : f32 from vector<1x1x1xf32>
      %c0_18 = arith.constant 0 : index
      %c0_19 = arith.constant 0 : index
      %29 = memref.load %arg4[%c0_18, %c0_19] : memref<1x1xf32, #tpu.memory_space<smem>>
      memref.store %28, %arg4[%c0_18, %c0_19] : memref<1x1xf32, #tpu.memory_space<smem>>
    } else {
    }
    return
  }
  func.func @transform_0(%arg0: i32) -> (i32, i32) {
    %c0_i32 = arith.constant 0 : i32
    %c0_i32_0 = arith.constant 0 : i32
    return %arg0, %c0_i32 : i32, i32
  }
  func.func @transform_1(%arg0: i32) -> (i32, i32) {
    %c0_i32 = arith.constant 0 : i32
    %c0_i32_0 = arith.constant 0 : i32
    return %arg0, %c0_i32 : i32, i32
  }
  func.func @transform_2(%arg0: i32) -> (i32, i32) {
    %c0_i32 = arith.constant 0 : i32
    %c0_i32_0 = arith.constant 0 : i32
    return %arg0, %c0_i32 : i32, i32
  }
  func.func @transform_3(%arg0: i32) -> (i32, i32) {
    %c0_i32 = arith.constant 0 : i32
    %c0_i32_0 = arith.constant 0 : i32
    %c0_i32_1 = arith.constant 0 : i32
    return %c0_i32, %c0_i32_0 : i32, i32
  }
}

</mosaic_0001>

<llo_original>
// kernel: tpu_custom_call.1
$region0: #{tpu_custom_call.1}
  #allocation0 [shape = 'u32[]', space=smem, size = 0x4, offset = 0x4, fixed_abs, tag = 'smem constant byte address 0x4 - core index']
  #allocation1 [shape = 'u32[144,128]{1,0:T(1,128)}', space=vmem, size = 0x12000, scoped, tag = 'internal scratch']
  #allocation2 [shape = 'f32[8,1]{1,0:T(8,128)}', space=vmem, size = 0x1000, scoped, tag = 'scratch operand']
  %s0 = inlined_call_operand.hbm [shape: f32[8,32], index: 0, kind: input, shape index: {}]
  %s1 = inlined_call_operand.hbm [shape: f32[8,32], index: 1, kind: input, shape index: {}]
  %s2 = inlined_call_operand.hbm [shape: f32[8,32], index: 2, kind: input, shape index: {}]
  %s3 = inlined_call_operand.hbm [shape: f32[1,1], index: 3, kind: output, shape index: {}]
  %s4 = sld [smem:[#allocation0]]
  $region42: #{tpu_custom_call.1} parent=0
    _
  %s6 = ssub.s32 1, %s4
  %s7 = scalar_select 0, %s6, %s4
  $region1: #{tpu_custom_call.1} parent=0
    #allocation3 [shape = 'u8[4096]{0}', space=vmem, size = 0x1000, scoped, tag = 'input window, operand 0, single buffered']
    #allocation4 [shape = 's32[1]{0}', space=sflag, size = 0x4, scoped, tag = 'scoped memory for tpu_custom_call.1']
    #allocation5 [shape = 's32[1]{0}', space=sflag, size = 0x4, scoped, tag = 'scoped memory for tpu_custom_call.1']
    #allocation6 [shape = 'u8[4096]{0}', space=vmem, size = 0x1000, scoped, tag = 'input window, operand 1, single buffered']
    #allocation7 [shape = 's32[1]{0}', space=sflag, size = 0x4, scoped, tag = 'scoped memory for tpu_custom_call.1']
    #allocation8 [shape = 'u8[4096]{0}', space=vmem, size = 0x1000, scoped, tag = 'input window, operand 2, single buffered']
    #allocation9 [shape = 'u8[512]{0}', space=smem, size = 0x200, scoped, tag = 'output window, operand 0, single buffered']
    %8 = vsyncpa [#allocation4], 0
    %9 = vsyncpa [#allocation7], 0
    %10 = vsyncpa [#allocation5], 0
    // Predicated region
    $region2: #{tpu_custom_call.1} parent=1 // pred_check
      _
    $region3: #{tpu_custom_call.1} parent=1 // pred_check_branch
      %12 = sbr.rel (0) target = $region5
    $region4: #{tpu_custom_call.1} parent=1 // pred_region
      %s14 = ssub.s32 128, 128
      %15 = vsyncadd [#allocation4], %s14
      %s17 = sshll.u32 [#allocation3], 4
      %s18 = int_to_ptr.vmem [resolvable:$true] %s17
      %20 = dma.hbm_to_vmem [thread:$0]  %s0, 128, %s18, [#allocation4]
    $region5: #{tpu_custom_call.1} parent=1 // pred_fallthru
      _
    // Predicated region
    $region6: #{tpu_custom_call.1} parent=1 // pred_check
      _
    $region7: #{tpu_custom_call.1} parent=1 // pred_check_branch
      %22 = sbr.rel (0) target = $region9
    $region8: #{tpu_custom_call.1} parent=1 // pred_region
      %s24 = ssub.s32 128, 128
      %25 = vsyncadd [#allocation7], %s24
      %s27 = sshll.u32 [#allocation6], 4
      %s28 = int_to_ptr.vmem [resolvable:$true] %s27
      %30 = dma.hbm_to_vmem [thread:$0]  %s1, 128, %s28, [#allocation7]
    $region9: #{tpu_custom_call.1} parent=1 // pred_fallthru
      _
    // Predicated region
    $region10: #{tpu_custom_call.1} parent=1 // pred_check
      _
    $region11: #{tpu_custom_call.1} parent=1 // pred_check_branch
      %32 = sbr.rel (0) target = $region13
    $region12: #{tpu_custom_call.1} parent=1 // pred_region
      %s34 = ssub.s32 128, 128
      %35 = vsyncadd [#allocation7], %s34
      %s37 = sshll.u32 [#allocation8], 4
      %s38 = int_to_ptr.vmem [resolvable:$true] %s37
      %40 = dma.hbm_to_vmem [thread:$0]  %s2, 128, %s38, [#allocation7]
    $region13: #{tpu_custom_call.1} parent=1 // pred_fallthru
      _
    // Predicated region
    $region14: #{tpu_custom_call.1} parent=1 // pred_check
      _
    $region15: #{tpu_custom_call.1} parent=1 // pred_check_branch
      %42 = sbr.rel (0) target = $region17
    $region16: #{tpu_custom_call.1} parent=1 // pred_region
      %43 = dma.done [#allocation4], 128
    $region17: #{tpu_custom_call.1} parent=1 // pred_fallthru
      _
    // Predicated region
    $region18: #{tpu_custom_call.1} parent=1 // pred_check
      _
    $region19: #{tpu_custom_call.1} parent=1 // pred_check_branch
      %45 = sbr.rel (0) target = $region21
    $region20: #{tpu_custom_call.1} parent=1 // pred_region
      %46 = dma.done [#allocation7], 128
    $region21: #{tpu_custom_call.1} parent=1 // pred_fallthru
      _
    // Predicated region
    $region22: #{tpu_custom_call.1} parent=1 // pred_check
      _
    $region23: #{tpu_custom_call.1} parent=1 // pred_check_branch
      %48 = sbr.rel (0) target = $region25
    $region24: #{tpu_custom_call.1} parent=1 // pred_region
      %49 = dma.done [#allocation7], 128
    $region25: #{tpu_custom_call.1} parent=1 // pred_fallthru
      _
    %v50 = vld [vmem:[#allocation3] sm:$0xff]
    %v51 = vld [vmem:[#allocation6] sm:$0xff]
    %v52 = vld [vmem:[#allocation8] sm:$0xff]
    %v53 = vsub.f32 %v52, %v51
    %v54 = vmul.f32 %v50, 2.0
    %v55 = vsub.f32 %v54, %v51
    %v56 = vsub.f32 %v55, %v52
    %v57 = vmul.f32 %v53, %v56
    %vm58 = vcmask 261120
    %v59 = vsel %vm58, %v57, 0.0
    %60 = vadd.xlane.f32.xlu0 %v59
    %v61 = vpop.xlane.xlu0 %60
    %v62 = vadd.f32 %v61, 1.0
    %v63 = vmax.f32 %v62, 0.0
    %p64 = scmp.eq.s32.totalorder 0, 0
    // Predicated region
    $region26: #{tpu_custom_call.1} parent=1 // pred_check
      %p65 = pneg %p64
    $region27: #{tpu_custom_call.1} parent=1 // pred_check_branch
      %67 = sbr.rel (%p65) target = $region29
    $region28: #{tpu_custom_call.1} parent=1 // pred_region
      %vm68 = vcmask 7168
      %69 = vst.msk [vmem:[#allocation2] sm:$0xff] %vm68, 0.0
    $region29: #{tpu_custom_call.1} parent=1 // pred_fallthru
      _
    %v70 = vld [vmem:[#allocation2] sm:$0xff]
    %v71 = vadd.f32 %v70, %v63
    %vm72 = vcmask 7168
    %73 = vst.msk [vmem:[#allocation2] sm:$0xff] %vm72, %v71
    // Predicated region
    $region30: #{tpu_custom_call.1} parent=1 // pred_check
      %p74 = pneg %p64
    $region31: #{tpu_custom_call.1} parent=1 // pred_check_branch
      %76 = sbr.rel (%p74) target = $region33
    $region32: #{tpu_custom_call.1} parent=1 // pred_region
      %v77 = vld [vmem:[#allocation2] sm:$0xff]
      %v78 = vsel %vm72, %v77, 0.0
      %79 = vadd.xlane.f32.xlu0 %v78
      %v80 = vpop.xlane.xlu0 %79
      %v81 = vrot.slane %v80, 4
      %v82 = vadd.f32 %v80, %v81
      %v83 = vrot.slane %v82, 2
      %v84 = vadd.f32 %v82, %v83
      %v85 = vrot.slane %v84, 1
      %v86 = vadd.f32 %v84, %v85
      %s87 = vtos %v86
      %s88 = scalar_lea.smem [#allocation9], 0
      %89 = sst [smem:[%s88]] %s87
    $region33: #{tpu_custom_call.1} parent=1 // pred_fallthru
      _
    // Predicated region
    $region34: #{tpu_custom_call.1} parent=1 // pred_check
      _
    $region35: #{tpu_custom_call.1} parent=1 // pred_check_branch
      %91 = sbr.rel (0) target = $region37
    $region36: #{tpu_custom_call.1} parent=1 // pred_region
      %s93 = ssub.s32 16, 16
      %94 = vsyncadd [#allocation5], %s93
      %97 = dma.smem_to_hbm [#allocation9], 16, %s3, [#allocation5]
    $region37: #{tpu_custom_call.1} parent=1 // pred_fallthru
      _
    // Predicated region
    $region38: #{tpu_custom_call.1} parent=1 // pred_check
      _
    $region39: #{tpu_custom_call.1} parent=1 // pred_check_branch
      %99 = sbr.rel (0) target = $region41
    $region40: #{tpu_custom_call.1} parent=1 // pred_region
      %100 = dma.done [#allocation5], 16
    $region41: #{tpu_custom_call.1} parent=1 // pred_fallthru
      _
    %101 = sfence
    %102 = vsyncpa [#allocation4], 1
    %103 = vsyncpa [#allocation7], 1
    %104 = vsyncpa [#allocation5], 1

</llo_original>
